<compile_context>
chip_gen: v5e
topology: v5e:2x2
jax: 0.10.0
libtpu: 0.0.40
codegen_flags: <defaults>
</compile_context>

<pallas_src>
import functools

import jax
import jax.numpy as jnp
from jax import lax
from jax.experimental import pallas as pl
from jax.experimental.pallas import tpu as pltpu


def _make_kernel(epsilon: float, n_classes: int, n_rows: int, tb: int):
    eps_over_c = epsilon / n_classes
    hit_weight = eps_over_c + (1.0 - epsilon)
    needs_mask = (n_rows % tb) != 0

    def kernel(preds_ref, tgt_ref, out_ref, acc_ref):
        i = pl.program_id(0)

        @pl.when(i == 0)
        def _init():
            acc_ref[0] = jnp.float32(0.0)

        x = preds_ref[...].astype(jnp.float32)          # (TB, C)
        tgt = tgt_ref[...]                              # (TB, 1) int32

        # Stable row LSE: 2 cross-lane reductions (rowmax, rowsum(exp)).
        m = jnp.max(x, axis=1, keepdims=True)                    # (TB, 1)
        s = jnp.sum(jnp.exp(x - m), axis=1, keepdims=True)       # (TB, 1)
        lse = jnp.log(s) + m                                     # (TB, 1)

        # One weighted row-sum folds the smoothing term and the NLL pick.
        col = lax.broadcasted_iota(jnp.int32, x.shape, 1)        # (TB, C)
        w = jnp.where(col == tgt, hit_weight, eps_over_c)        # (TB, C)
        wsum = jnp.sum(x * w, axis=1, keepdims=True)             # (TB, 1)

        per_row = lse - wsum                                     # (TB, 1)
        if needs_mask:
            # Mask zero-padded rows of the ragged last tile.
            row = lax.broadcasted_iota(jnp.int32, (tb, 1), 0) + i * tb
            per_row = jnp.where(row < n_rows, per_row, 0.0)

        acc_ref[0] += jnp.sum(per_row)

        @pl.when(i == pl.num_programs(0) - 1)
        def _finalize():
            out_ref[0, 0] = acc_ref[0] / jnp.float32(n_rows)

    return kernel


def _choose_tb(n_rows: int, n_classes: int) -> int:
    # Target ~8 MiB of f32 working set per batch tile (safe for v7x's 64 MiB
    # VMEM with double buffering; plenty of pipelining on v5e/v6e too).
    target_bytes = 8 << 20
    tb = max(1, target_bytes // max(1, n_classes * 4))
    tb = min(tb, max(n_rows, 16))
    tb = max(16, (tb // 16) * 16)       # multiple of 16 -> valid for f32 and bf16
    return int(tb)


@functools.partial(jax.jit, static_argnames=("epsilon",))
def label_smoothing_cross_entropy(preds, target, *, epsilon: float = 0.1):
    """preds: (B, C) float32/bfloat16, target: (B,) int -> scalar float32 loss."""
    B, C = preds.shape
    tb = _choose_tb(B, C)
    n_tiles = -(-B // tb)               # cdiv
    b_pad = n_tiles * tb

    tgt2d = target.astype(jnp.int32).reshape(B, 1)
    if b_pad != B:
        preds = jnp.pad(preds, ((0, b_pad - B), (0, 0)))
        tgt2d = jnp.pad(tgt2d, ((0, b_pad - B), (0, 0)))

    # Scoped-VMEM budget: 2x input buffers + f32 upcast/temporaries + headroom,
    # clamped under v7x's 64 MiB physical VMEM.
    tile_in_bytes = tb * C * preds.dtype.itemsize
    tile_f32_bytes = tb * C * 4
    vmem_limit = int(min(48 << 20,
                         max(16 << 20, 2 * tile_in_bytes + 3 * tile_f32_bytes)))

    out = pl.pallas_call(
        _make_kernel(float(epsilon), C, B, tb),
        out_shape=jax.ShapeDtypeStruct((1, 1), jnp.float32),
        grid_spec=pltpu.PrefetchScalarGridSpec(
            num_scalar_prefetch=0,
            grid=(n_tiles,),
            in_specs=[
                pl.BlockSpec((tb, C), lambda i: (i, 0)),   # preds batch tile
                pl.BlockSpec((tb, 1), lambda i: (i, 0)),   # target batch tile
            ],
            out_specs=pl.BlockSpec((1, 1), lambda i: (0, 0),
                                   memory_space=pltpu.SMEM),
            scratch_shapes=[pltpu.SMEM((1,), jnp.float32)],
        ),
        compiler_params=pltpu.CompilerParams(
            dimension_semantics=("arbitrary",),
            vmem_limit_bytes=vmem_limit,
        ),
    )(preds, tgt2d)
    return out[0, 0]


def _reference(preds, target, epsilon):
    B, C = preds.shape
    logp = jax.nn.log_softmax(preds.astype(jnp.float32), axis=1)
    loss = jnp.mean(-jnp.sum(logp, axis=-1))
    nll = jnp.mean(-logp[jnp.arange(B), target])
    return epsilon * (loss / C) + (1.0 - epsilon) * nll


if __name__ == "__main__":
    key = jax.random.PRNGKey(0)
    k1, k2, k3, k4 = jax.random.split(key, 4)

    # Case 1: small, tile == whole batch.
    B, C = 8, 128
    preds = jax.random.normal(k1, (B, C), dtype=jnp.float32)
    target = jax.random.randint(k2, (B,), 0, C, dtype=jnp.int32)
    loss = label_smoothing_cross_entropy(preds, target, epsilon=0.1)
    jax.block_until_ready(loss)
    ref = _reference(preds, target, 0.1)
    assert jnp.allclose(loss, ref, rtol=1e-5, atol=1e-5), (loss, ref)

    # Case 2: ragged batch (exercises padding mask + multi-step accumulation).
    B2, C2 = 19, 256
    preds2 = jax.random.normal(k3, (B2, C2), dtype=jnp.float32)
    target2 = jax.random.randint(k4, (B2,), 0, C2, dtype=jnp.int32)
    loss2 = label_smoothing_cross_entropy(preds2, target2, epsilon=0.1)
    jax.block_until_ready(loss2)
    ref2 = _reference(preds2, target2, 0.1)
    assert jnp.allclose(loss2, ref2, rtol=1e-5, atol=1e-5), (loss2, ref2)

    # Case 3: bf16 inputs (halves HBM traffic; f32 accumulation in-kernel).
    loss3 = label_smoothing_cross_entropy(preds2.astype(jnp.bfloat16), target2,
                                          epsilon=0.1)
    jax.block_until_ready(loss3)
    assert jnp.allclose(loss3, ref2, rtol=2e-2, atol=2e-2), (loss3, ref2)

    print("KERNEL_OK")
</pallas_src>

<mosaic_0001>
module attributes {stable_mosaic.version = 11 : i64} {
  func.func @kernel(%arg0: i32, %arg1: memref<16x128xf32, #tpu.memory_space<vmem>>, %arg2: memref<16x1xi32, #tpu.memory_space<vmem>>, %arg3: memref<1x1xf32, #tpu.memory_space<smem>>, %arg4: memref<1xf32, #tpu.memory_space<smem>>) attributes {dimension_semantics = [#tpu.dimension_semantics<arbitrary>], iteration_bounds = array<i64: 1>, scalar_prefetch = 0 : i64, scratch_operands = 1 : i64, tpu.core_type = #tpu.core_type<tc>, window_params = [{transform_indices = @transform_0, window_bounds = array<i64: 16, 128>}, {transform_indices = @transform_1, window_bounds = array<i64: 16, 1>}, {transform_indices = @transform_2, window_bounds = array<i64: 1, 1>}]} {
    %c0_i32 = arith.constant 0 : i32
    %0 = arith.cmpi eq, %arg0, %c0_i32 : i32
    %1 = arith.extui %0 : i1 to i32
    %c0_i32_0 = arith.constant 0 : i32
    %2 = arith.cmpi ne, %1, %c0_i32_0 : i32
    scf.if %2 {
      %cst_14 = arith.constant 0.000000e+00 : f32
      %c0_15 = arith.constant 0 : index
      %42 = memref.load %arg4[%c0_15] : memref<1xf32, #tpu.memory_space<smem>>
      memref.store %cst_14, %arg4[%c0_15] : memref<1xf32, #tpu.memory_space<smem>>
    } else {
    }
    %c0 = arith.constant 0 : index
    %c0_1 = arith.constant 0 : index
    %3 = vector.load %arg1[%c0, %c0_1] : memref<16x128xf32, #tpu.memory_space<vmem>>, vector<16x128xf32>
    %c0_2 = arith.constant 0 : index
    %c0_3 = arith.constant 0 : index
    %4 = vector.load %arg2[%c0_2, %c0_3] : memref<16x1xi32, #tpu.memory_space<vmem>>, vector<16x1xi32>
    %cst = arith.constant dense<0xFF800000> : vector<16xf32>
    %5 = vector.multi_reduction <maximumf>, %3, %cst [1] : vector<16x128xf32> to vector<16xf32>
    %6 = vector.shape_cast %5 : vector<16xf32> to vector<16x1xf32>
    %7 = vector.broadcast %6 : vector<16x1xf32> to vector<16x128xf32>
    %8 = arith.subf %3, %7 : vector<16x128xf32>
    %9 = math.exp %8 : vector<16x128xf32>
    %cst_4 = arith.constant dense<0.000000e+00> : vector<16xf32>
    %10 = vector.multi_reduction <add>, %9, %cst_4 [1] : vector<16x128xf32> to vector<16xf32>
    %11 = vector.shape_cast %10 : vector<16xf32> to vector<16x1xf32>
    %12 = math.log %11 : vector<16x1xf32>
    %13 = arith.addf %12, %6 : vector<16x1xf32>
    %14 = tpu.iota {dimensions = array<i32: 1>} : vector<16x128xi32>
    %15 = vector.broadcast %4 : vector<16x1xi32> to vector<16x128xi32>
    %16 = arith.cmpi eq, %14, %15 : vector<16x128xi32>
    %cst_5 = arith.constant 0.900781273 : f32
    %cst_6 = arith.constant 7.812500e-04 : f32
    %17 = vector.broadcast %cst_5 : f32 to vector<16x128xf32>
    %18 = vector.broadcast %cst_6 : f32 to vector<16x128xf32>
    %19 = arith.select %16, %17, %18 : vector<16x128xi1>, vector<16x128xf32>
    %20 = arith.mulf %3, %19 : vector<16x128xf32>
    %cst_7 = arith.constant dense<0.000000e+00> : vector<16xf32>
    %21 = vector.multi_reduction <add>, %20, %cst_7 [1] : vector<16x128xf32> to vector<16xf32>
    %22 = vector.shape_cast %21 : vector<16xf32> to vector<16x1xf32>
    %23 = arith.subf %13, %22 : vector<16x1xf32>
    %24 = tpu.iota {dimensions = array<i32: 0>} : vector<16x1xi32>
    %c16_i32 = arith.constant 16 : i32
    %25 = arith.muli %arg0, %c16_i32 : i32
    %26 = vector.broadcast %25 : i32 to vector<16x1xi32>
    %27 = arith.addi %24, %26 : vector<16x1xi32>
    %c8_i32 = arith.constant 8 : i32
    %28 = vector.broadcast %c8_i32 : i32 to vector<16x1xi32>
    %29 = arith.cmpi slt, %27, %28 : vector<16x1xi32>
    %cst_8 = arith.constant 0.000000e+00 : f32
    %30 = vector.broadcast %cst_8 : f32 to vector<16x1xf32>
    %31 = arith.select %29, %23, %30 : vector<16x1xi1>, vector<16x1xf32>
    %c0_9 = arith.constant 0 : index
    %32 = memref.load %arg4[%c0_9] : memref<1xf32, #tpu.memory_space<smem>>
    %33 = vector.shape_cast %31 : vector<16x1xf32> to vector<1x16x1xf32>
    %cst_10 = arith.constant dense<0.000000e+00> : vector<1xf32>
    %34 = vector.multi_reduction <add>, %33, %cst_10 [1, 2] : vector<1x16x1xf32> to vector<1xf32>
    %35 = vector.shape_cast %34 : vector<1xf32> to vector<1x1x1xf32>
    %36 = vector.extract %35[0, 0, 0] : f32 from vector<1x1x1xf32>
    %37 = arith.addf %32, %36 : f32
    %c0_11 = arith.constant 0 : index
    %38 = memref.load %arg4[%c0_11] : memref<1xf32, #tpu.memory_space<smem>>
    memref.store %37, %arg4[%c0_11] : memref<1xf32, #tpu.memory_space<smem>>
    %c0_i32_12 = arith.constant 0 : i32
    %39 = arith.cmpi eq, %arg0, %c0_i32_12 : i32
    %40 = arith.extui %39 : i1 to i32
    %c0_i32_13 = arith.constant 0 : i32
    %41 = arith.cmpi ne, %40, %c0_i32_13 : i32
    scf.if %41 {
      %c0_14 = arith.constant 0 : index
      %42 = memref.load %arg4[%c0_14] : memref<1xf32, #tpu.memory_space<smem>>
      %cst_15 = arith.constant 8.000000e+00 : f32
      %43 = arith.divf %42, %cst_15 : f32
      %c0_16 = arith.constant 0 : index
      %c0_17 = arith.constant 0 : index
      %44 = memref.load %arg3[%c0_16, %c0_17] : memref<1x1xf32, #tpu.memory_space<smem>>
      memref.store %43, %arg3[%c0_16, %c0_17] : memref<1x1xf32, #tpu.memory_space<smem>>
    } else {
    }
    return
  }
  func.func @transform_0(%arg0: i32) -> (i32, i32) {
    %c0_i32 = arith.constant 0 : i32
    %c0_i32_0 = arith.constant 0 : i32
    return %arg0, %c0_i32 : i32, i32
  }
  func.func @transform_1(%arg0: i32) -> (i32, i32) {
    %c0_i32 = arith.constant 0 : i32
    %c0_i32_0 = arith.constant 0 : i32
    return %arg0, %c0_i32 : i32, i32
  }
  func.func @transform_2(%arg0: i32) -> (i32, i32) {
    %c0_i32 = arith.constant 0 : i32
    %c0_i32_0 = arith.constant 0 : i32
    %c0_i32_1 = arith.constant 0 : i32
    return %c0_i32, %c0_i32_0 : i32, i32
  }
}

</mosaic_0001>

<llo_original>
// kernel: label_smoothing_cross_entropy.1
$region0: #{label_smoothing_cross_entropy.1}
  #allocation0 [shape = 'u32[]', space=smem, size = 0x4, offset = 0x4, fixed_abs, tag = 'smem constant byte address 0x4 - core index']
  #allocation1 [shape = 'u32[72,128]{1,0:T(1,128)}', space=vmem, size = 0x9000, scoped, tag = 'internal scratch']
  #allocation2 [shape = 'f32[1]{0:T(128)}', space=smem, size = 0x200, scoped, tag = 'scratch operand']
  %s0 = inlined_call_operand.vmem [shape: f32[16,128], index: 0, kind: input, shape index: {}]
  %s1 = inlined_call_operand.vmem [shape: s32[16,1], index: 1, kind: input, shape index: {}]
  %s2 = inlined_call_operand.hbm [shape: f32[1,1], index: 2, kind: output, shape index: {}]
  %s3 = sld [smem:[#allocation0]]
  $region26: #{label_smoothing_cross_entropy.1} parent=0
    _
  %s5 = ssub.s32 1, %s3
  %s6 = scalar_select 0, %s5, %s3
  $region1: #{label_smoothing_cross_entropy.1} parent=0
    #allocation3 [shape = 'u8[512]{0}', space=smem, size = 0x200, scoped, tag = 'output window, operand 0, single buffered']
    #allocation4 [shape = 's32[1]{0}', space=sflag, size = 0x4, scoped, tag = 'scoped memory for label_smoothing_cross_entropy.1']
    %7 = vsyncpa [#allocation4], 0
    // Predicated region
    $region2: #{label_smoothing_cross_entropy.1} parent=1 // pred_check
      _
    $region3: #{label_smoothing_cross_entropy.1} parent=1 // pred_check_branch
      %9 = sbr.rel (0) target = $region5
    $region4: #{label_smoothing_cross_entropy.1} parent=1 // pred_region
      _
    $region5: #{label_smoothing_cross_entropy.1} parent=1 // pred_fallthru
      _
    // Predicated region
    $region6: #{label_smoothing_cross_entropy.1} parent=1 // pred_check
      _
    $region7: #{label_smoothing_cross_entropy.1} parent=1 // pred_check_branch
      %11 = sbr.rel (0) target = $region9
    $region8: #{label_smoothing_cross_entropy.1} parent=1 // pred_region
      _
    $region9: #{label_smoothing_cross_entropy.1} parent=1 // pred_fallthru
      _
    %p12 = scmp.eq.s32.totalorder 0, 0
    // Predicated region
    $region10: #{label_smoothing_cross_entropy.1} parent=1 // pred_check
      %p13 = pneg %p12
    $region11: #{label_smoothing_cross_entropy.1} parent=1 // pred_check_branch
      %15 = sbr.rel (%p13) target = $region13
    $region12: #{label_smoothing_cross_entropy.1} parent=1 // pred_region
      %s16 = scalar_lea.smem [#allocation2], 0
      %17 = sst [smem:[%s16]] 0.0
    $region13: #{label_smoothing_cross_entropy.1} parent=1 // pred_fallthru
      _
    %v18 = vld [vmem:[%s0] sm:$0xff]
    %v19 = vld [vmem:[%s0 + $0x8] sm:$0xff]
    %v20 = vld [vmem:[%s1] sm:$0xff]
    %v21 = vld [vmem:[%s1 + $0x8] sm:$0xff]
    %22 = vmax.xlane.f32.xlu0 %v18
    %v23 = vpop.xlane.xlu0 %22
    %24 = vmax.xlane.f32.xlu0 %v19
    %v25 = vpop.xlane.xlu0 %24
    %v26 = vsub.f32 %v18, %v23
    %v27 = vsub.f32 %v19, %v25
    %v28 = vmul.f32 %v26, 1.442695
    %v29 = vpow.pop %v28
    %v30 = vmul.f32 %v27, 1.442695
    %v31 = vpow.pop %v30
    %32 = vadd.xlane.f32.xlu0 %v29
    %v33 = vpop.xlane.xlu0 %32
    %34 = vadd.xlane.f32.xlu0 %v31
    %v35 = vpop.xlane.xlu0 %34
    %v36 = vlog2.pop %v33
    %v37 = vmul.f32 %v36, 0.6931472
    %v38 = vlog2.pop %v35
    %v39 = vmul.f32 %v38, 0.6931472
    %v40 = vadd.f32 %v37, %v23
    %v41 = vadd.f32 %v39, %v25
    %v42 = vlaneseq
    %v43 = vand.u32 %v42, 127
    %44 = vset.pattern.permute.xlu0 0
    %45 = vperm.xlu0 %44, %v20
    %v46 = vpop.permute.xlu0 %45
    %47 = vset.pattern.permute.xlu0 0
    %48 = vperm.xlu0 %47, %v21
    %v49 = vpop.permute.xlu0 %48
    %vm50 = vcmp.eq.s32.totalorder %v43, %v46
    %vm51 = vcmp.eq.s32.totalorder %v43, %v49
    %v52 = vsel %vm50, 0.9007813, 0.00078125
    %v53 = vsel %vm51, 0.9007813, 0.00078125
    %v54 = vmul.f32 %v18, %v52
    %v55 = vmul.f32 %v19, %v53
    %56 = vadd.xlane.f32.xlu0 %v54
    %v57 = vpop.xlane.xlu0 %56
    %58 = vadd.xlane.f32.xlu0 %v55
    %v59 = vpop.xlane.xlu0 %58
    %v60 = vsub.f32 %v40, %v57
    %v61 = vsub.f32 %v41, %v59
    %v62 = vlaneseq
    %v63 = vshrl.u32 %v62, 7
    %v64 = vadd.s32 %v63, 8
    %s65 = smul.u32 0, 16
    %v66 = vstv %s65
    %v67 = vadd.s32 %v63, %v66
    %v68 = vadd.s32 %v64, %v66
    %vm69 = vcmp.lt.s32.totalorder %v67, 8
    %vm70 = vcmp.lt.s32.totalorder %v68, 8
    %v71 = vsel %vm69, %v60, 0.0
    %v72 = vsel %vm70, %v61, 0.0
    %s73 = sld [smem:[#allocation2]]
    %vm74 = vcmask 7168
    %v75 = vsel %vm74, %v71, 0.0
    %v76 = vsel %vm74, %v72, 0.0
    %v77 = vadd.f32 %v75, %v76
    %78 = vadd.xlane.f32.xlu0 %v77
    %v79 = vpop.xlane.xlu0 %78
    %v80 = vrot.slane %v79, 4
    %v81 = vadd.f32 %v79, %v80
    %v82 = vrot.slane %v81, 2
    %v83 = vadd.f32 %v81, %v82
    %v84 = vrot.slane %v83, 1
    %v85 = vadd.f32 %v83, %v84
    %s86 = vtos %v85
    %s87 = sadd.f32 %s73, %s86
    %s88 = scalar_lea.smem [#allocation2], 0
    %89 = sst [smem:[%s88]] %s87
    // Predicated region
    $region14: #{label_smoothing_cross_entropy.1} parent=1 // pred_check
      %p90 = pneg %p12
    $region15: #{label_smoothing_cross_entropy.1} parent=1 // pred_check_branch
      %92 = sbr.rel (%p90) target = $region17
    $region16: #{label_smoothing_cross_entropy.1} parent=1 // pred_region
      %s93 = sld [smem:[#allocation2]]
      %v94 = vrcp.pop 8.0
      %v95 = vmul.f32 8.0, %v94
      %v96 = vsub.f32 1.0, %v95
      %v97 = vmul.f32 %v94, %v96
      %v98 = vadd.f32 %v94, %v97
      %vm99 = vweird.f32 %v94
      %v100 = vsel %vm99, %v94, %v98
      %s101 = vtos %v100
      %s102 = smul.f32 %s93, %s101
      %s103 = scalar_lea.smem [#allocation3], 0
      %104 = sst [smem:[%s103]] %s102
    $region17: #{label_smoothing_cross_entropy.1} parent=1 // pred_fallthru
      _
    // Predicated region
    $region18: #{label_smoothing_cross_entropy.1} parent=1 // pred_check
      _
    $region19: #{label_smoothing_cross_entropy.1} parent=1 // pred_check_branch
      %106 = sbr.rel (0) target = $region21
    $region20: #{label_smoothing_cross_entropy.1} parent=1 // pred_region
      %108 = vsyncadd [#allocation4], 0
      %s110 = sshll.u32 %s2, 4
      %s111 = int_to_ptr.hbm [resolvable:$true] %s110
      %113 = dma.smem_to_hbm [#allocation3], 16, %s111, [#allocation4]
    $region21: #{label_smoothing_cross_entropy.1} parent=1 // pred_fallthru
      _
    // Predicated region
    $region22: #{label_smoothing_cross_entropy.1} parent=1 // pred_check
      _
    $region23: #{label_smoothing_cross_entropy.1} parent=1 // pred_check_branch
      %115 = sbr.rel (0) target = $region25
    $region24: #{label_smoothing_cross_entropy.1} parent=1 // pred_region
      %117 = dma.done [#allocation4], 16
    $region25: #{label_smoothing_cross_entropy.1} parent=1 // pred_fallthru
      _
    %118 = sfence
    %119 = vsyncpa [#allocation4], 1

</llo_original>
